<compile_context>
chip_gen: v7x
topology: tpu7x:2x2x1
jax: 0.10.0
libtpu: 0.0.40
codegen_flags: <defaults>
</compile_context>

<pallas_src>
import jax
import jax.numpy as jnp
from jax.experimental import pallas as pl
from jax.experimental.pallas import tpu as pltpu


def _notears_kernel(x_ref, w1_ref, b1_ref, w2sel_ref, b2_ref, o_ref):
    # z^T = W1 @ x^T + b1  -> (d*m, tn): lane-dense on the row tile (tn on the
    # 128-lane axis). Contraction is over d (last axis of both operands), the
    # MXU-friendly "q @ k^T" orientation — no explicit transpose materialized.
    zt = jax.lax.dot_general(
        w1_ref[...], x_ref[...],
        dimension_numbers=(((1,), (1,)), ((), ())),
        preferred_element_type=jnp.float32,
    ) + b1_ref[...]                                           # (dm, tn)

    # sigmoid(z) = 0.5 * (tanh(z/2) + 1): 1 EUP push/element vs exp + recip.
    ht = 0.5 * jnp.tanh(0.5 * zt) + 0.5                       # (dm, tn)

    # LocallyConnected layer: single MXU matmul against the exact
    # block-diagonal selector, contracting the hidden axis of both operands.
    # (MXU matmuls here accumulate in f32; exact zeros elsewhere in w2sel.)
    out = jax.lax.dot_general(
        ht, w2sel_ref[...],
        dimension_numbers=(((0,), (0,)), ((), ())),
        preferred_element_type=jnp.float32,
    ) + b2_ref[...]                                           # (tn, d)

    o_ref[...] = out.astype(o_ref.dtype)


def _round_up(a, b):
    return (a + b - 1) // b * b


def notears_mlp_forward(x, wpos, wneg, bpos, bneg, w2, b2, *, tn=1024):
    n, d = x.shape
    dm = wpos.shape[0]
    out_dtype = x.dtype

    # --- Fold parameters once in XLA (wrapper side, tiny one-off ops) -------
    w1 = (wpos - wneg).astype(jnp.float32)                     # (dm, d)
    b1 = (bpos - bneg).reshape(dm, 1).astype(jnp.float32)      # (dm, 1)
    w2_2d = w2.reshape(d, -1).astype(jnp.float32)              # (d, m)
    # Block-diagonal selector: w2sel[j*m + k, j] = w2[j, k]; exact zeros else.
    w2sel = (w2_2d[:, :, None] *
             jnp.eye(d, dtype=jnp.float32)[:, None, :]).reshape(dm, d)
    b2_2d = b2.reshape(1, d).astype(jnp.float32)               # (1, d)
    x_in = x.astype(jnp.float32)

    # --- Row tiling: big tiles, no batch padding (Pallas clips the tail) ----
    tn_eff = max(8, min(_round_up(tn, 8), _round_up(n, 8)))
    # Ensure >= 2 grid steps so megacore ("parallel") feeds both v7x TCs.
    if n > 8 and pl.cdiv(n, tn_eff) < 2:
        tn_eff = _round_up(pl.cdiv(n, 2), 8)
    grid = (pl.cdiv(n, tn_eff),)

    # --- VMEM budget (lane-padding aware) & per-generation scoped cap -------
    f32b, lane = 4, 128
    dm_sub = _round_up(dm, 8)
    d_lane = max(d, lane)
    vmem_need = f32b * (
        2 * tn_eff * d_lane          # x row tiles (double-buffered, lane-padded)
        + 2 * tn_eff * d_lane        # out row tiles (double-buffered)
        + 2 * dm_sub * d_lane        # w1 + w2sel (single-buffered, Buffered(1))
        + dm_sub * lane + 8 * lane   # biases
        + dm_sub * tn_eff            # h^T intermediate (lane-dense)
        + tn_eff * d_lane            # second-matmul result temp
    )
    try:
        vmem_cap = int(pltpu.get_tpu_info().vmem_capacity_bytes)
    except Exception:
        vmem_cap = 64 << 20          # conservative: v7x per-TensorCore VMEM
    vmem_limit = int(min(max(int(vmem_need * 1.5), 32 << 20),
                         int(vmem_cap * 0.8)))

    compiler_params = pltpu.CompilerParams(
        dimension_semantics=("parallel",),
        vmem_limit_bytes=vmem_limit,
    )
    cost = pl.CostEstimate(
        flops=4 * n * d * dm,                    # two matmuls, d/dm contractions
        transcendentals=n * dm,                  # one tanh per hidden element
        bytes_accessed=(2 * n * d + 2 * dm * d + dm + d) * f32b,
    )

    # Constant-index operands: single-buffered (double-buffering them would
    # only waste VMEM since the block never changes).
    def _const_spec(shape):
        return pl.BlockSpec(shape, lambda i: (0, 0), pipeline_mode=pl.Buffered(1))

    out = pl.pallas_call(
        _notears_kernel,
        out_shape=jax.ShapeDtypeStruct((n, d), jnp.float32),
        grid_spec=pltpu.PrefetchScalarGridSpec(
            num_scalar_prefetch=0,
            grid=grid,
            in_specs=[
                pl.BlockSpec((tn_eff, d), lambda i: (i, 0)),   # x row tile
                _const_spec((dm, d)),                          # folded fc1 weight
                _const_spec((dm, 1)),                          # folded fc1 bias
                _const_spec((dm, d)),                          # block-diag fc2 sel
                _const_spec((1, d)),                           # fc2 bias
            ],
            out_specs=pl.BlockSpec((tn_eff, d), lambda i: (i, 0)),
        ),
        compiler_params=compiler_params,
        cost_estimate=cost,
    )(x_in, w1, b1, w2sel, b2_2d)

    return out.astype(out_dtype)


def notears_mlp_reference(x, wpos, wneg, bpos, bneg, w2, b2):
    """Pure-JAX reference mirroring the PyTorch forward."""
    n, d = x.shape
    m = wpos.shape[0] // d
    h = jax.nn.sigmoid(x @ (wpos - wneg).T + (bpos - bneg))
    h = h.reshape(n, d, m)
    out = jnp.einsum('ndm,dmo->ndo', h, w2) + b2[None, :, :]
    return out[..., 0]


if __name__ == "__main__":
    # Small shapes consistent with NotearsMLP(d, m_hidden); n is NOT a multiple
    # of the row tile, exercising the ragged-trailing-block (clipped write) path.
    n, d, m = 50, 4, 10
    key = jax.random.PRNGKey(0)
    kx, k1, k2, k3, k4, k5, k6 = jax.random.split(key, 7)

    x = jax.random.normal(kx, (n, d), dtype=jnp.float32)

    # fc1_pos / fc1_neg: nn.Linear(d, d*m), weights re-init uniform(0, 0.1).
    wpos = jax.random.uniform(k1, (d * m, d), jnp.float32, 0.0, 0.1)
    wneg = jax.random.uniform(k2, (d * m, d), jnp.float32, 0.0, 0.1)
    # Linear default bias init: uniform(-1/sqrt(fan_in), 1/sqrt(fan_in)).
    bnd1 = 1.0 / jnp.sqrt(d)
    bpos = jax.random.uniform(k3, (d * m,), jnp.float32, -bnd1, bnd1)
    bneg = jax.random.uniform(k4, (d * m,), jnp.float32, -bnd1, bnd1)
    # fc2 = LocallyConnected(d, m, 1): uniform(-sqrt(1/m), sqrt(1/m)).
    bnd2 = jnp.sqrt(1.0 / m)
    w2 = jax.random.uniform(k5, (d, m, 1), jnp.float32, -bnd2, bnd2)
    b2 = jax.random.uniform(k6, (d, 1), jnp.float32, -bnd2, bnd2)

    out = notears_mlp_forward(x, wpos, wneg, bpos, bneg, w2, b2)
    out = jax.block_until_ready(out)

    ref = notears_mlp_reference(x, wpos, wneg, bpos, bneg, w2, b2)
    assert out.shape == (n, d)
    assert jnp.allclose(out, ref, atol=1e-5, rtol=1e-5)

    # TODO(synk): h_func / trace_expm (scipy matrix exponential) is an
    # optimizer-side scalar constraint, not part of forward(); left to host JAX.
    print("KERNEL_OK")
</pallas_src>

<mosaic_0001>
module attributes {stable_mosaic.version = 11 : i64} {
  func.func @_notears_kernel(%arg0: i32, %arg1: memref<32x4xf32, #tpu.memory_space<vmem>>, %arg2: memref<40x4xf32, #tpu.memory_space<vmem>>, %arg3: memref<40x1xf32, #tpu.memory_space<vmem>>, %arg4: memref<40x4xf32, #tpu.memory_space<vmem>>, %arg5: memref<1x4xf32, #tpu.memory_space<vmem>>, %arg6: memref<32x4xf32, #tpu.memory_space<vmem>>) attributes {dimension_semantics = [#tpu.dimension_semantics<parallel>], iteration_bounds = array<i64: 2>, scalar_prefetch = 0 : i64, scratch_operands = 0 : i64, tpu.core_type = #tpu.core_type<tc>, window_params = [{transform_indices = @transform_0, window_bounds = array<i64: 32, 4>}, {pipeline_mode = #tpu.pipeline_mode<synchronous>, transform_indices = @transform_1, window_bounds = array<i64: 40, 4>}, {pipeline_mode = #tpu.pipeline_mode<synchronous>, transform_indices = @transform_2, window_bounds = array<i64: 40, 1>}, {pipeline_mode = #tpu.pipeline_mode<synchronous>, transform_indices = @transform_3, window_bounds = array<i64: 40, 4>}, {pipeline_mode = #tpu.pipeline_mode<synchronous>, transform_indices = @transform_4, window_bounds = array<i64: 1, 4>}, {transform_indices = @transform_5, window_bounds = array<i64: 32, 4>}]} {
    %c0 = arith.constant 0 : index
    %c0_0 = arith.constant 0 : index
    %0 = vector.load %arg2[%c0, %c0_0] : memref<40x4xf32, #tpu.memory_space<vmem>>, vector<40x4xf32>
    %c0_1 = arith.constant 0 : index
    %c0_2 = arith.constant 0 : index
    %1 = vector.load %arg1[%c0_1, %c0_2] : memref<32x4xf32, #tpu.memory_space<vmem>>, vector<32x4xf32>
    %cst = arith.constant dense<0.000000e+00> : vector<40x32xf32>
    %2 = tpu.matmul %0, %1, %cst {dimension_numbers = #tpu.dot_dimension_numbers<[1], [1], [0], [0], [0, 0, 1, 0], [], []>} : vector<40x4xf32>, vector<32x4xf32>, vector<40x32xf32> -> vector<40x32xf32>
    %c0_3 = arith.constant 0 : index
    %c0_4 = arith.constant 0 : index
    %3 = vector.load %arg3[%c0_3, %c0_4] : memref<40x1xf32, #tpu.memory_space<vmem>>, vector<40x1xf32>
    %4 = vector.broadcast %3 : vector<40x1xf32> to vector<40x32xf32>
    %5 = arith.addf %2, %4 : vector<40x32xf32>
    %cst_5 = arith.constant 5.000000e-01 : f32
    %6 = vector.broadcast %cst_5 : f32 to vector<40x32xf32>
    %7 = arith.mulf %6, %5 : vector<40x32xf32>
    %8 = math.tanh %7 : vector<40x32xf32>
    %cst_6 = arith.constant 5.000000e-01 : f32
    %9 = vector.broadcast %cst_6 : f32 to vector<40x32xf32>
    %10 = arith.mulf %9, %8 : vector<40x32xf32>
    %cst_7 = arith.constant 5.000000e-01 : f32
    %11 = vector.broadcast %cst_7 : f32 to vector<40x32xf32>
    %12 = arith.addf %10, %11 : vector<40x32xf32>
    %c0_8 = arith.constant 0 : index
    %c0_9 = arith.constant 0 : index
    %13 = vector.load %arg4[%c0_8, %c0_9] : memref<40x4xf32, #tpu.memory_space<vmem>>, vector<40x4xf32>
    %cst_10 = arith.constant dense<0.000000e+00> : vector<32x4xf32>
    %14 = tpu.matmul %12, %13, %cst_10 {dimension_numbers = #tpu.dot_dimension_numbers<[0], [0], [1], [1], [0, 1, 1, 1], [], []>} : vector<40x32xf32>, vector<40x4xf32>, vector<32x4xf32> -> vector<32x4xf32>
    %c0_11 = arith.constant 0 : index
    %c0_12 = arith.constant 0 : index
    %15 = vector.load %arg5[%c0_11, %c0_12] : memref<1x4xf32, #tpu.memory_space<vmem>>, vector<1x4xf32>
    %16 = vector.broadcast %15 : vector<1x4xf32> to vector<32x4xf32>
    %17 = arith.addf %14, %16 : vector<32x4xf32>
    %c0_13 = arith.constant 0 : index
    %c0_14 = arith.constant 0 : index
    %18 = vector.load %arg6[%c0_13, %c0_14] : memref<32x4xf32, #tpu.memory_space<vmem>>, vector<32x4xf32>
    tpu.vector_store %arg6[%c0_13, %c0_14], %17 {strides = array<i32>} : memref<32x4xf32, #tpu.memory_space<vmem>>, vector<32x4xf32>,
    return
  }
  func.func @transform_0(%arg0: i32) -> (i32, i32) {
    %c0_i32 = arith.constant 0 : i32
    %c0_i32_0 = arith.constant 0 : i32
    return %arg0, %c0_i32 : i32, i32
  }
  func.func @transform_1(%arg0: i32) -> (i32, i32) {
    %c0_i32 = arith.constant 0 : i32
    %c0_i32_0 = arith.constant 0 : i32
    %c0_i32_1 = arith.constant 0 : i32
    return %c0_i32, %c0_i32_0 : i32, i32
  }
  func.func @transform_2(%arg0: i32) -> (i32, i32) {
    %c0_i32 = arith.constant 0 : i32
    %c0_i32_0 = arith.constant 0 : i32
    %c0_i32_1 = arith.constant 0 : i32
    return %c0_i32, %c0_i32_0 : i32, i32
  }
  func.func @transform_3(%arg0: i32) -> (i32, i32) {
    %c0_i32 = arith.constant 0 : i32
    %c0_i32_0 = arith.constant 0 : i32
    %c0_i32_1 = arith.constant 0 : i32
    return %c0_i32, %c0_i32_0 : i32, i32
  }
  func.func @transform_4(%arg0: i32) -> (i32, i32) {
    %c0_i32 = arith.constant 0 : i32
    %c0_i32_0 = arith.constant 0 : i32
    %c0_i32_1 = arith.constant 0 : i32
    return %c0_i32, %c0_i32_0 : i32, i32
  }
  func.func @transform_5(%arg0: i32) -> (i32, i32) {
    %c0_i32 = arith.constant 0 : i32
    %c0_i32_0 = arith.constant 0 : i32
    return %arg0, %c0_i32 : i32, i32
  }
}

</mosaic_0001>

<llo_original>
// kernel: tpu_custom_call.1
$region0: #{tpu_custom_call.1}
  #allocation0 [shape = 'u32[]', space=smem, size = 0x4, offset = 0x4, fixed_abs, tag = 'smem constant byte address 0x4 - core index']
  #allocation1 [shape = 'u32[144,128]{1,0:T(1,128)}', space=vmem, size = 0x12000, scoped, tag = 'internal scratch']
  %s0 = inlined_call_operand.vmem [shape: f32[50,4], index: 0, kind: input, shape index: {}]
  %s1 = inlined_call_operand.vmem [shape: f32[40,4], index: 1, kind: input, shape index: {}]
  %s2 = inlined_call_operand.vmem [shape: f32[40,1], index: 2, kind: input, shape index: {}]
  %s3 = inlined_call_operand.vmem [shape: f32[40,4], index: 3, kind: input, shape index: {}]
  %s4 = inlined_call_operand.vmem [shape: f32[1,4], index: 4, kind: input, shape index: {}]
  %s5 = inlined_call_operand.vmem [shape: f32[50,4], index: 5, kind: output, shape index: {}]
  %s6 = sld [smem:[#allocation0]]
  $region101: #{tpu_custom_call.1} parent=0
    _
  %s8 = ssub.s32 1, %s6
  %s9 = scalar_select 0, %s8, %s6
  $region1: #{tpu_custom_call.1} parent=0
    #allocation2 [shape = 'u8[32768]{0}', space=vmem, size = 0x8000, scoped, tag = 'output window, operand 0']
    loop: start=0, step=1, limit=4
    $region2: #{tpu_custom_call.1} parent=1 // loop_pre_header
      _
    $region3: #{tpu_custom_call.1} parent=1 // loop_header
      %s11 = sphi 0, %s15
      %p12 = scmp.ge.s32.totalorder %s11, 4
      %s21 = sphi 0, %s23
      %s24 = sphi 0, %s21
      %s25 = sphi 0, %s24
      %s41 = sphi 0, %s25
      %s45 = sphi 0, %s45
      %s47 = sphi 0, %s45
      %s48 = sphi 0, %s47
      %s62 = sphi 0, %s48
      %s66 = sphi 0, %s66
      %s68 = sphi 0, %s66
      %s69 = sphi 0, %s68
      %s83 = sphi 0, %s69
      %s87 = sphi 0, %s87
      %s89 = sphi 0, %s87
      %s90 = sphi 0, %s89
      %s104 = sphi 0, %s90
      %s108 = sphi 0, %s108
      %s110 = sphi 0, %s108
      %s111 = sphi 0, %s110
      %s125 = sphi 0, %s111
      %s131 = sphi 0, %s133
      %s134 = sphi 0, %s131
      %s135 = sphi 0, %s134
      %s151 = sphi 0, %s135
    $region4: #{tpu_custom_call.1} parent=1 // loop_header_branch
      %14 = sbr.rel (%p12) target = $region8
    $region5: #{tpu_custom_call.1} parent=1 // loop_body
      %s16 = ssub.s32 %s11, 1
      %s17 = ssub.s32 %s11, 2
      %s18 = sadd.s32 %s11, 1
      %s19 = ssub.s32 %s11, %s18
      %p20 = scmp.eq.s32.totalorder %s19, 0
      %s22 = sadd.s32 %s21, 1
      %s23 = scalar_select %p20, %s21, %s22
      %p26 = pneg %p20
      %p27 = scmp.eq.s32.totalorder %s11, 1
      %p28 = por %p26, %p27
      %p29 = scmp.ne.s32.totalorder %s21, %s24
      %p30 = scmp.eq.s32.totalorder %s11, 0
      %p31 = por %p29, %p30
      %p32 = scmp.ne.s32.totalorder %s21, %s24
      %p33 = scmp.eq.s32.totalorder %s16, 1
      %p34 = por %p32, %p33
      %p35 = scmp.ne.s32.totalorder %s24, %s25
      %p36 = scmp.eq.s32.totalorder %s16, 0
      %p37 = por %p35, %p36
      %p38 = scmp.ne.s32.totalorder %s24, %s25
      %p39 = scmp.eq.s32.totalorder %s17, 1
      %p40 = por %p38, %p39
      %p42 = scmp.ne.s32.totalorder %s25, %s41
      %p43 = scmp.eq.s32.totalorder %s17, 0
      %p44 = por %p42, %p43
      %s46 = sadd.s32 %s45, 1
      %p49 = scmp.eq.s32.totalorder %s11, 1
      %p50 = scmp.ne.s32.totalorder %s45, %s47
      %p51 = scmp.eq.s32.totalorder %s11, 0
      %p52 = por %p50, %p51
      %p53 = scmp.ne.s32.totalorder %s45, %s47
      %p54 = scmp.eq.s32.totalorder %s16, 1
      %p55 = por %p53, %p54
      %p56 = scmp.ne.s32.totalorder %s47, %s48
      %p57 = scmp.eq.s32.totalorder %s16, 0
      %p58 = por %p56, %p57
      %p59 = scmp.ne.s32.totalorder %s47, %s48
      %p60 = scmp.eq.s32.totalorder %s17, 1
      %p61 = por %p59, %p60
      %p63 = scmp.ne.s32.totalorder %s48, %s62
      %p64 = scmp.eq.s32.totalorder %s17, 0
      %p65 = por %p63, %p64
      %s67 = sadd.s32 %s66, 1
      %p70 = scmp.eq.s32.totalorder %s11, 1
      %p71 = scmp.ne.s32.totalorder %s66, %s68
      %p72 = scmp.eq.s32.totalorder %s11, 0
      %p73 = por %p71, %p72
      %p74 = scmp.ne.s32.totalorder %s66, %s68
      %p75 = scmp.eq.s32.totalorder %s16, 1
      %p76 = por %p74, %p75
      %p77 = scmp.ne.s32.totalorder %s68, %s69
      %p78 = scmp.eq.s32.totalorder %s16, 0
      %p79 = por %p77, %p78
      %p80 = scmp.ne.s32.totalorder %s68, %s69
      %p81 = scmp.eq.s32.totalorder %s17, 1
      %p82 = por %p80, %p81
      %p84 = scmp.ne.s32.totalorder %s69, %s83
      %p85 = scmp.eq.s32.totalorder %s17, 0
      %p86 = por %p84, %p85
      %s88 = sadd.s32 %s87, 1
      %p91 = scmp.eq.s32.totalorder %s11, 1
      %p92 = scmp.ne.s32.totalorder %s87, %s89
      %p93 = scmp.eq.s32.totalorder %s11, 0
      %p94 = por %p92, %p93
      %p95 = scmp.ne.s32.totalorder %s87, %s89
      %p96 = scmp.eq.s32.totalorder %s16, 1
      %p97 = por %p95, %p96
      %p98 = scmp.ne.s32.totalorder %s89, %s90
      %p99 = scmp.eq.s32.totalorder %s16, 0
      %p100 = por %p98, %p99
      %p101 = scmp.ne.s32.totalorder %s89, %s90
      %p102 = scmp.eq.s32.totalorder %s17, 1
      %p103 = por %p101, %p102
      %p105 = scmp.ne.s32.totalorder %s90, %s104
      %p106 = scmp.eq.s32.totalorder %s17, 0
      %p107 = por %p105, %p106
      %s109 = sadd.s32 %s108, 1
      %p112 = scmp.eq.s32.totalorder %s11, 1
      %p113 = scmp.ne.s32.totalorder %s108, %s110
      %p114 = scmp.eq.s32.totalorder %s11, 0
      %p115 = por %p113, %p114
      %p116 = scmp.ne.s32.totalorder %s108, %s110
      %p117 = scmp.eq.s32.totalorder %s16, 1
      %p118 = por %p116, %p117
      %p119 = scmp.ne.s32.totalorder %s110, %s111
      %p120 = scmp.eq.s32.totalorder %s16, 0
      %p121 = por %p119, %p120
      %p122 = scmp.ne.s32.totalorder %s110, %s111
      %p123 = scmp.eq.s32.totalorder %s17, 1
      %p124 = por %p122, %p123
      %p126 = scmp.ne.s32.totalorder %s111, %s125
      %p127 = scmp.eq.s32.totalorder %s17, 0
      %p128 = por %p126, %p127
      %s129 = ssub.s32 %s11, %s18
      %p130 = scmp.eq.s32.totalorder %s129, 0
      %s132 = sadd.s32 %s131, 1
      %s133 = scalar_select %p130, %s131, %s132
      %p136 = pneg %p130
      %p137 = scmp.eq.s32.totalorder %s11, 1
      %p138 = por %p136, %p137
      %p139 = scmp.ne.s32.totalorder %s131, %s134
      %p140 = scmp.eq.s32.totalorder %s11, 0
      %p141 = por %p139, %p140
      %p142 = scmp.ne.s32.totalorder %s131, %s134
      %p143 = scmp.eq.s32.totalorder %s16, 1
      %p144 = por %p142, %p143
      %p145 = scmp.ne.s32.totalorder %s134, %s135
      %p146 = scmp.eq.s32.totalorder %s16, 0
      %p147 = por %p145, %p146
      %p148 = scmp.ne.s32.totalorder %s134, %s135
      %p149 = scmp.eq.s32.totalorder %s17, 1
      %p150 = por %p148, %p149
      %p152 = scmp.ne.s32.totalorder %s135, %s151
      %p153 = scmp.eq.s32.totalorder %s17, 0
      %p154 = por %p152, %p153
      %p155 = scmp.le.s32.totalorder 1, %s11
      %p156 = scmp.lt.s32.totalorder %s11, 3
      %p157 = pnand %p155, %p156
      %p158 = pneg %p157
      // Predicated region
      $region9: #{tpu_custom_call.1} parent=5 // pred_check
        _
      $region10: #{tpu_custom_call.1} parent=5 // pred_check_branch
        %160 = sbr.rel (%p157) target = $region12
      $region11: #{tpu_custom_call.1} parent=5 // pred_region
        %s161 = ssub.s32 %s11, 1
        // Predicated region
        $region13: #{tpu_custom_call.1} parent=11 // pred_check
          %p162 = pneg %p58
        $region14: #{tpu_custom_call.1} parent=11 // pred_check_branch
          %164 = sbr.rel (%p162) target = $region16
        $region15: #{tpu_custom_call.1} parent=11 // pred_region
          _
        $region16: #{tpu_custom_call.1} parent=11 // pred_fallthru
          _
        // Predicated region
        $region17: #{tpu_custom_call.1} parent=11 // pred_check
          %p165 = pneg %p79
        $region18: #{tpu_custom_call.1} parent=11 // pred_check_branch
          %167 = sbr.rel (%p165) target = $region20
        $region19: #{tpu_custom_call.1} parent=11 // pred_region
          _
        $region20: #{tpu_custom_call.1} parent=11 // pred_fallthru
          _
        // Predicated region
        $region21: #{tpu_custom_call.1} parent=11 // pred_check
          %p168 = pneg %p100
        $region22: #{tpu_custom_call.1} parent=11 // pred_check_branch
          %170 = sbr.rel (%p168) target = $region24
        $region23: #{tpu_custom_call.1} parent=11 // pred_region
          _
        $region24: #{tpu_custom_call.1} parent=11 // pred_fallthru
          _
        // Predicated region
        $region25: #{tpu_custom_call.1} parent=11 // pred_check
          %p171 = pneg %p121
        $region26: #{tpu_custom_call.1} parent=11 // pred_check_branch
          %173 = sbr.rel (%p171) target = $region28
        $region27: #{tpu_custom_call.1} parent=11 // pred_region
          _
        $region28: #{tpu_custom_call.1} parent=11 // pred_fallthru
          _
      $region12: #{tpu_custom_call.1} parent=5 // pred_fallthru
        _
      %p174 = scmp.lt.s32.totalorder %s11, 2
      // Predicated region
      $region29: #{tpu_custom_call.1} parent=5 // pred_check
        %p175 = pneg %p174
      $region30: #{tpu_custom_call.1} parent=5 // pred_check_branch
        %177 = sbr.rel (%p175) target = $region32
      $region31: #{tpu_custom_call.1} parent=5 // pred_region
        // Predicated region
        $region33: #{tpu_custom_call.1} parent=31 // pred_check
          %p178 = pneg %p31
        $region34: #{tpu_custom_call.1} parent=31 // pred_check_branch
          %180 = sbr.rel (%p178) target = $region36
        $region35: #{tpu_custom_call.1} parent=31 // pred_region
          %s181 = smul.u32 4, %s11
          %s182 = ssub.s32 7, %s181
          %p183 = scmp.lt.s32.totalorder %s182, 4
          %s184 = scalar_select %p183, %s182, 4
          %s185 = smul.u32 128, %s184
          %p186 = scmp.lt.s32.totalorder %s181, 6
          %s187 = scalar_select %p186, %s181, 6
          %s188 = smul.addr %s187, 8
          %s189 = scalar_lea.vmem %s0, %s188
          %s190 = smul.u32 4, %s11
          %s191 = ssub.s32 7, %s190
          %p192 = scmp.lt.s32.totalorder %s191, 4
          %s193 = scalar_select %p192, %s191, 4
          %s194 = smul.u32 128, %s193
        $region36: #{tpu_custom_call.1} parent=31 // pred_fallthru
          _
      $region32: #{tpu_custom_call.1} parent=5 // pred_fallthru
        _
      %p195 = scmp.le.s32.totalorder 1, %s11
      %p196 = scmp.lt.s32.totalorder %s11, 3
      %p197 = pnand %p195, %p196
      %p198 = pneg %p197
      // Predicated region
      $region37: #{tpu_custom_call.1} parent=5 // pred_check
        _
      $region38: #{tpu_custom_call.1} parent=5 // pred_check_branch
        %200 = sbr.rel (%p197) target = $region40
      $region39: #{tpu_custom_call.1} parent=5 // pred_region
        %s201 = ssub.s32 %s11, 1
        %s202 = smul.u32 4, %s16
        %s203 = ssub.s32 7, %s202
        %p204 = scmp.lt.s32.totalorder %s203, 4
        %s205 = scalar_select %p204, %s203, 4
        %s206 = smul.u32 128, %s205
        %p207 = scmp.lt.s32.totalorder %s202, 6
        %s208 = scalar_select %p207, %s202, 6
        %s209 = smul.addr %s208, 8
        %s210 = scalar_lea.vmem %s0, %s209
        %p211 = pneg %p37
        %p212 = pneg %p34
        %p213 = pneg %p58
        %p214 = pneg %p55
        %p215 = pneg %p79
        %p216 = pneg %p76
        %p217 = pneg %p100
        %p218 = pneg %p97
        %p219 = pneg %p121
        %p220 = pneg %p118
        %p221 = pneg %p147
        %p222 = pneg %p144
        %s223 = sand.u32 %s134, 1
        %s224 = sand.u32 %s134, 1
        %s225 = smul.addr %s224, 32
        %s226 = scalar_lea.vmem [#allocation2], %s225
        %s227 = smul.u32 4, %s16
        %s228 = ssub.s32 7, %s227
        %p229 = scmp.lt.s32.totalorder %s228, 4
        %s230 = scalar_select %p229, %s228, 4
        %s231 = smul.u32 128, %s230
        %p232 = scmp.lt.s32.totalorder %s227, 6
        %s233 = scalar_select %p232, %s227, 6
        %s234 = smul.addr %s233, 8
        %s235 = scalar_lea.vmem %s0, %s234
        %s236 = smul.u32 4, %s16
        %s237 = ssub.s32 7, %s236
        %p238 = scmp.lt.s32.totalorder %s237, 4
        %s239 = scalar_select %p238, %s237, 4
        %s240 = smul.u32 128, %s239
        %s241 = smul.u32 4, %s16
        %s242 = ssub.s32 7, %s241
        %p243 = scmp.lt.s32.totalorder %s242, 4
        %s244 = scalar_select %p243, %s242, 4
        %s245 = smul.u32 128, %s244
        %v246 = vld [vmem:[%s1] sm:$0xff]
        %v247 = vld [vmem:[%s1 + $0x8] sm:$0xff]
        %v248 = vld [vmem:[%s1 + $0x10] sm:$0xff]
        %v249 = vld [vmem:[%s1 + $0x18] sm:$0xff]
        %v250 = vld [vmem:[%s1 + $0x20] sm:$0xff]
        %v251 = vld [vmem:[%s235] sm:$0xff]
        %v252 = vld [vmem:[%s235 + $0x8] sm:$0xff]
        %v253 = vld [vmem:[%s235 + $0x10] sm:$0xff]
        %v254 = vld [vmem:[%s235 + $0x18] sm:$0xff]
        %v255 = vld [vmem:[%s2] sm:$0xff]
        %v256 = vld [vmem:[%s2 + $0x8] sm:$0xff]
        %v257 = vld [vmem:[%s2 + $0x10] sm:$0xff]
        %v258 = vld [vmem:[%s2 + $0x18] sm:$0xff]
        %v259 = vld [vmem:[%s2 + $0x20] sm:$0xff]
        %261 = vset.pattern.permute.xlu0 0
        %262 = vperm.xlu0 %261, %v255
        %v263 = vpop.permute.xlu0 %262
        %266 = vset.pattern.permute.xlu0 0
        %267 = vperm.xlu0 %266, %v256
        %v268 = vpop.permute.xlu0 %267
        %271 = vset.pattern.permute.xlu0 0
        %272 = vperm.xlu0 %271, %v257
        %v273 = vpop.permute.xlu0 %272
        %276 = vset.pattern.permute.xlu0 0
        %277 = vperm.xlu0 %276, %v258
        %v278 = vpop.permute.xlu0 %277
        %281 = vset.pattern.permute.xlu0 0
        %282 = vperm.xlu0 %281, %v259
        %v283 = vpop.permute.xlu0 %282
        %vm285 = vcmask 31744
        %v287 = vsel %vm285, %v246, 0
        %v290 = vsel %vm285, %v247, 0
        %v293 = vsel %vm285, %v248, 0
        %v296 = vsel %vm285, %v249, 0
        %v299 = vsel %vm285, %v250, 0
        %v302 = vsel %vm285, %v251, 0
        %v305 = vsel %vm285, %v252, 0
        %v308 = vsel %vm285, %v253, 0
        %v311 = vsel %vm285, %v254, 0
        %313 = vmatprep.subr.mxu0 0.0
        %314 = vmatpush1.xpose.msra.mxu0 %v302
        %315 = vmatprep.subr.mxu0 0.0
        %316 = vmatpush1.xpose.msra.mxu0 %v305
        %317 = vmatprep.subr.mxu0 0.0
        %318 = vmatpush1.xpose.msra.mxu0 %v308
        %319 = vmatprep.subr.mxu0 0.0
        %320 = vmatpush1.xpose.msra.mxu0 %v311
        %321 = vmatprep.subr.mxu0 0.0
        %322 = vmatpush1.xpose.msra.mxu0 0.0
        %323 = vmatprep.subr.mxu0 0.0
        %324 = vmatpush1.xpose.msra.mxu0 0.0
        %325 = vmatprep.subr.mxu0 0.0
        %326 = vmatpush1.xpose.msra.mxu0 0.0
        %327 = vmatprep.subr.mxu0 0.0
        %328 = vmatpush1.xpose.msra.mxu0 0.0
        %329 = vmatprep.subr.mxu0 0.0
        %330 = vmatpush1.xpose.msra.mxu0 0.0
        %331 = vmatprep.subr.mxu0 0.0
        %332 = vmatpush1.xpose.msra.mxu0 0.0
        %333 = vmatprep.subr.mxu0 0.0
        %334 = vmatpush1.xpose.msra.mxu0 0.0
        %335 = vmatprep.subr.mxu0 0.0
        %336 = vmatpush1.xpose.msra.mxu0 0.0
        %337 = vmatprep.subr.mxu0 0.0
        %338 = vmatpush1.xpose.msra.mxu0 0.0
        %339 = vmatprep.subr.mxu0 0.0
        %340 = vmatpush1.xpose.msra.mxu0 0.0
        %341 = vmatprep.subr.mxu0 0.0
        %342 = vmatpush1.xpose.msra.mxu0 0.0
        %343 = vmatprep.subr.mxu0 0.0
        %344 = vmatpush1.xpose.msra.mxu0 0.0
        %345 = vmatprep.subr.mxu0 0.0
        %346 = vmatpush1.xpose.msra.mxu0 0.0
        %347 = vmatprep.subr.mxu0 0.0
        %348 = vmatpush1.xpose.msra.mxu0 0.0
        %349 = vmatprep.subr.mxu0 0.0
        %350 = vmatpush1.xpose.msra.mxu0 0.0
        %351 = vmatprep.subr.mxu0 0.0
        %352 = vmatpush1.xpose.msra.mxu0 0.0
        %353 = vmatprep.subr.mxu0 0.0
        %354 = vmatpush1.xpose.msra.mxu0 0.0
        %355 = vmatprep.subr.mxu0 0.0
        %356 = vmatpush1.xpose.msra.mxu0 0.0
        %357 = vmatprep.subr.mxu0 0.0
        %358 = vmatpush1.xpose.msra.mxu0 0.0
        %359 = vmatprep.subr.mxu0 0.0
        %360 = vmatpush1.xpose.msra.mxu0 0.0
        %361 = vmatprep.subr.mxu0 0.0
        %362 = vmatpush1.xpose.msra.mxu0 0.0
        %363 = vmatprep.subr.mxu0 0.0
        %364 = vmatpush1.xpose.msra.mxu0 0.0
        %365 = vmatprep.subr.mxu0 0.0
        %366 = vmatpush1.xpose.msra.mxu0 0.0
        %367 = vmatprep.subr.mxu0 0.0
        %368 = vmatpush1.xpose.msra.mxu0 0.0
        %369 = vmatprep.subr.mxu0 0.0
        %370 = vmatpush1.xpose.msra.mxu0 0.0
        %371 = vmatprep.subr.mxu0 0.0
        %372 = vmatpush1.xpose.msra.mxu0 0.0
        %373 = vmatprep.subr.mxu0 0.0
        %374 = vmatpush1.xpose.msra.mxu0 0.0
        %375 = vmatprep.subr.mxu0 0.0
        %376 = vmatpush1.xpose.msra.mxu0 0.0
        %377 = vmatprep.mubr.f32.mxu0 0.0
        %378 = vmatmul.mubr.f32.gmra.mrb[0].mxu0 %v287
        %v379 = vpop.f32.mrb[0].mxu0
        %v380 = vadd.f32 %v263, %v379
        %v381 = vpop.f32.mrb[0].mxu0
        %382 = vmatprep.mubr.f32.mxu0 0.0
        %383 = vmatmul.mubr.f32.gmra.mrb[0].mxu0 %v290
        %v384 = vpop.f32.mrb[0].mxu0
        %v385 = vadd.f32 %v268, %v384
        %v386 = vpop.f32.mrb[0].mxu0
        %387 = vmatprep.mubr.f32.mxu0 0.0
        %388 = vmatmul.mubr.f32.gmra.mrb[0].mxu0 %v293
        %v389 = vpop.f32.mrb[0].mxu0
        %v390 = vadd.f32 %v273, %v389
        %v391 = vpop.f32.mrb[0].mxu0
        %392 = vmatprep.mubr.f32.mxu0 0.0
        %393 = vmatmul.mubr.f32.gmra.mrb[0].mxu0 %v296
        %v394 = vpop.f32.mrb[0].mxu0
        %v395 = vadd.f32 %v278, %v394
        %v396 = vpop.f32.mrb[0].mxu0
        %397 = vmatprep.mubr.f32.mxu0 0.0
        %398 = vmatmul.mubr.f32.gmra.mrb[0].mxu0 %v299
        %v399 = vpop.f32.mrb[0].mxu0
        %v400 = vadd.f32 %v283, %v399
        %v401 = vpop.f32.mrb[0].mxu0
        %402 = vdwg.mxu0
        %v403 = vmul.f32 %v380, 0.5
        %v404 = vmul.f32 %v385, 0.5
        %v405 = vmul.f32 %v390, 0.5
        %v406 = vmul.f32 %v395, 0.5
        %v407 = vmul.f32 %v400, 0.5
        %v408 = vtanh.pop %v403
        %v409 = vtanh.pop %v404
        %v410 = vtanh.pop %v405
        %v411 = vtanh.pop %v406
        %v412 = vtanh.pop %v407
        %v413 = vmul.f32 %v408, 0.5
        %v414 = vmul.f32 %v409, 0.5
        %v415 = vmul.f32 %v410, 0.5
        %v416 = vmul.f32 %v411, 0.5
        %v417 = vmul.f32 %v412, 0.5
        %v418 = vadd.f32 %v413, 0.5
        %v419 = vadd.f32 %v414, 0.5
        %v420 = vadd.f32 %v415, 0.5
        %v421 = vadd.f32 %v416, 0.5
        %v422 = vadd.f32 %v417, 0.5
        %v423 = vld [vmem:[%s3] sm:$0xff]
        %v424 = vld [vmem:[%s3 + $0x8] sm:$0xff]
        %v425 = vld [vmem:[%s3 + $0x10] sm:$0xff]
        %v426 = vld [vmem:[%s3 + $0x18] sm:$0xff]
        %v427 = vld [vmem:[%s3 + $0x20] sm:$0xff]
        %v428 = vld [vmem:[%s4] sm:$0x1]
        %v430 = vlaneseq
        %v431 = vshrl.u32 %v430, 7
        %v432 = vsub.s32 0, %v431
        %v433 = vrot.slane %v428, %v432
        %435 = vxpose.xlu0.b32.start [1/16] %v418, 128
        %436 = vxpose.xlu0.b32.cont [2/16] %v419, 128
        %437 = vxpose.xlu0.b32.cont [3/16] %v420, 128
        %438 = vxpose.xlu0.b32.cont [4/16] %v421, 128
        %439 = vxpose.xlu0.b32.cont [5/16] %v422, 128
        %440 = vxpose.xlu0.b32.cont [6/16] 0.0, 128
        %441 = vxpose.xlu0.b32.cont [7/16] 0.0, 128
        %442 = vxpose.xlu0.b32.cont [8/16] 0.0, 128
        %443 = vxpose.xlu0.b32.cont [9/16] 0.0, 128
        %444 = vxpose.xlu0.b32.cont [10/16] 0.0, 128
        %445 = vxpose.xlu0.b32.cont [11/16] 0.0, 128
        %446 = vxpose.xlu0.b32.cont [12/16] 0.0, 128
        %447 = vxpose.xlu0.b32.cont [13/16] 0.0, 128
        %448 = vxpose.xlu0.b32.cont [14/16] 0.0, 128
        %449 = vxpose.xlu0.b32.cont [15/16] 0.0, 128
        %450 = vxpose.xlu0.b32.end [16/16] 0.0, 128
        %v451 = vpop.trf.xlu0
        %v452 = vpop.trf.xlu0
        %v453 = vpop.trf.xlu0
        %v454 = vpop.trf.xlu0
        %v455 = vpop.trf.xlu0
        %v456 = vpop.trf.xlu0
        %v457 = vpop.trf.xlu0
        %v458 = vpop.trf.xlu0
        %v459 = vpop.trf.xlu0
        %v460 = vpop.trf.xlu0
        %v461 = vpop.trf.xlu0
        %v462 = vpop.trf.xlu0
        %v463 = vpop.trf.xlu0
        %v464 = vpop.trf.xlu0
        %v465 = vpop.trf.xlu0
        %v466 = vpop.trf.xlu0
        %vm467 = vcmask 326656
        %v469 = vsel %vm467, %v451, 0
        %v472 = vsel %vm467, %v452, 0
        %v475 = vsel %vm467, %v453, 0
        %v478 = vsel %vm467, %v454, 0
        %480 = vmatprep.subr.mxu0 0.0
        %481 = vmatpush1.msra.mxu0 %v423
        %482 = vmatprep.subr.mxu0 0.0
        %483 = vmatpush1.msra.mxu0 %v424
        %484 = vmatprep.subr.mxu0 0.0
        %485 = vmatpush1.msra.mxu0 %v425
        %486 = vmatprep.subr.mxu0 0.0
        %487 = vmatpush1.msra.mxu0 %v426
        %488 = vmatprep.subr.mxu0 0.0
        %489 = vmatpush1.msra.mxu0 %v427
        %490 = vmatprep.subr.mxu0 0.0
        %491 = vmatpush1.msra.mxu0 0.0
        %492 = vmatprep.subr.mxu0 0.0
        %493 = vmatpush1.msra.mxu0 0.0
        %494 = vmatprep.subr.mxu0 0.0
        %495 = vmatpush1.msra.mxu0 0.0
        %496 = vmatprep.subr.mxu0 0.0
        %497 = vmatpush1.msra.mxu0 0.0
        %498 = vmatprep.subr.mxu0 0.0
        %499 = vmatpush1.msra.mxu0 0.0
        %500 = vmatprep.subr.mxu0 0.0
        %501 = vmatpush1.msra.mxu0 0.0
        %502 = vmatprep.subr.mxu0 0.0
        %503 = vmatpush1.msra.mxu0 0.0
        %504 = vmatprep.subr.mxu0 0.0
        %505 = vmatpush1.msra.mxu0 0.0
        %506 = vmatprep.subr.mxu0 0.0
        %507 = vmatpush1.msra.mxu0 0.0
        %508 = vmatprep.subr.mxu0 0.0
        %509 = vmatpush1.msra.mxu0 0.0
        %510 = vmatprep.subr.mxu0 0.0
        %511 = vmatpush1.msra.mxu0 0.0
        %512 = vmatprep.subr.mxu0 0.0
        %513 = vmatpush1.msra.mxu0 0.0
        %514 = vmatprep.subr.mxu0 0.0
        %515 = vmatpush1.msra.mxu0 0.0
        %516 = vmatprep.subr.mxu0 0.0
        %517 = vmatpush1.msra.mxu0 0.0
        %518 = vmatprep.subr.mxu0 0.0
        %519 = vmatpush1.msra.mxu0 0.0
        %520 = vmatprep.subr.mxu0 0.0
        %521 = vmatpush1.msra.mxu0 0.0
        %522 = vmatprep.subr.mxu0 0.0
        %523 = vmatpush1.msra.mxu0 0.0
        %524 = vmatprep.subr.mxu0 0.0
        %525 = vmatpush1.msra.mxu0 0.0
        %526 = vmatprep.subr.mxu0 0.0
        %527 = vmatpush1.msra.mxu0 0.0
        %528 = vmatprep.subr.mxu0 0.0
        %529 = vmatpush1.msra.mxu0 0.0
        %530 = vmatprep.subr.mxu0 0.0
        %531 = vmatpush1.msra.mxu0 0.0
        %532 = vmatprep.subr.mxu0 0.0
        %533 = vmatpush1.msra.mxu0 0.0
        %534 = vmatprep.subr.mxu0 0.0
        %535 = vmatpush1.msra.mxu0 0.0
        %536 = vmatprep.subr.mxu0 0.0
        %537 = vmatpush1.msra.mxu0 0.0
        %538 = vmatprep.subr.mxu0 0.0
        %539 = vmatpush1.msra.mxu0 0.0
        %540 = vmatprep.subr.mxu0 0.0
        %541 = vmatpush1.msra.mxu0 0.0
        %542 = vmatprep.subr.mxu0 0.0
        %543 = vmatpush1.msra.mxu0 0.0
        %544 = vmatprep.mubr.f32.mxu0 0.0
        %545 = vmatmul.mubr.f32.gmra.mrb[0].mxu0 %v469
        %v546 = vpop.f32.mrb[0].mxu0
        %v547 = vadd.f32 %v433, %v546
        %v548 = vpop.f32.mrb[0].mxu0
        %549 = vmatprep.mubr.f32.mxu0 0.0
        %550 = vmatmul.mubr.f32.gmra.mrb[0].mxu0 %v472
        %v551 = vpop.f32.mrb[0].mxu0
        %v552 = vadd.f32 %v433, %v551
        %v553 = vpop.f32.mrb[0].mxu0
        %554 = vmatprep.mubr.f32.mxu0 0.0
        %555 = vmatmul.mubr.f32.gmra.mrb[0].mxu0 %v475
        %v556 = vpop.f32.mrb[0].mxu0
        %v557 = vadd.f32 %v433, %v556
        %v558 = vpop.f32.mrb[0].mxu0
        %559 = vmatprep.mubr.f32.mxu0 0.0
        %560 = vmatmul.mubr.f32.gmra.mrb[0].mxu0 %v478
        %v561 = vpop.f32.mrb[0].mxu0
        %v562 = vadd.f32 %v433, %v561
        %v563 = vpop.f32.mrb[0].mxu0
        %564 = vdwg.mxu0
        %565 = vst.msk [vmem:[%s226] sm:$0xff] %vm285, %v547
        %566 = vst.msk [vmem:[%s226 + $0x8] sm:$0xff] %vm285, %v552
        %567 = vst.msk [vmem:[%s226 + $0x10] sm:$0xff] %vm285, %v557
        %568 = vst.msk [vmem:[%s226 + $0x18] sm:$0xff] %vm285, %v562
        %s569 = sand.u32 %s134, 1
        %s570 = sand.u32 %s134, 1
        %s571 = smul.addr %s570, 32
        %s572 = scalar_lea.vmem [#allocation2], %s571
        // Predicated region
        $region41: #{tpu_custom_call.1} parent=39 // pred_check
          %p573 = pneg %p144
        $region42: #{tpu_custom_call.1} parent=39 // pred_check_branch
          %575 = sbr.rel (%p573) target = $region44
        $region43: #{tpu_custom_call.1} parent=39 // pred_region
          %s576 = smul.u32 4, %s16
          %s577 = ssub.s32 7, %s576
          %p578 = scmp.lt.s32.totalorder %s577, 4
          %s579 = scalar_select %p578, %s577, 4
          %s580 = smul.u32 128, %s579
          %p581 = scmp.ne.s32.totalorder 0, %s580
          %s582 = smul.addr %s576, 8
          %s583 = scalar_lea.vmem %s5, %s582
          // Predicated region
          $region45: #{tpu_custom_call.1} parent=43 // pred_check
            %p584 = pneg %p581
          $region46: #{tpu_custom_call.1} parent=43 // pred_check_branch
            %586 = sbr.rel (%p584) target = $region48
          $region47: #{tpu_custom_call.1} parent=43 // pred_region
            // Predicated region
            $region49: #{tpu_custom_call.1} parent=47 // pred_check
              _
            $region50: #{tpu_custom_call.1} parent=47 // pred_check_branch
              %588 = sbr.rel (0) target = $region52
            $region51: #{tpu_custom_call.1} parent=47 // pred_region
              // Predicated region
              $region71: #{tpu_custom_call.1} parent=51 // pred_check
                _
              $region72: #{tpu_custom_call.1} parent=51 // pred_check_branch
                %643 = sbr.rel (0) target = $region74
              $region73: #{tpu_custom_call.1} parent=51 // pred_region
                %s644 = sshrl.u32 %s579, 2
                // While loop
                $region75: #{tpu_custom_call.1} parent=73 // loop_pre_header
                  _
                $region76: #{tpu_custom_call.1} parent=73 // loop_header
                  %s646 = sphi 0, %s648
                  %p647 = scmp.ge.s32.totalorder %s646, %s644
                  %s651 = sphi 0, %s664
                  %s652 = sphi %s572, %s667
                  %s653 = sphi %s583, %s668
                $region77: #{tpu_custom_call.1} parent=73 // loop_header_branch
                  %650 = sbr.rel (%p647) target = $region81
                $region78: #{tpu_custom_call.1} parent=73 // loop_body
                  %v654 = vld [vmem:[%s652] sm:$0xff]
                  %655 = vst [vmem:[%s653] sm:$0xff] %v654
                  %v656 = vld [vmem:[%s652 + $0x8] sm:$0xff]
                  %657 = vst [vmem:[%s653 + $0x8] sm:$0xff] %v656
                  %v658 = vld [vmem:[%s652 + $0x10] sm:$0xff]
                  %659 = vst [vmem:[%s653 + $0x10] sm:$0xff] %v658
                  %v660 = vld [vmem:[%s652 + $0x18] sm:$0xff]
                  %661 = vst [vmem:[%s653 + $0x18] sm:$0xff] %v660
                  %s662 = sadd.s32 1, %s651
                  %p663 = scmp.ge.s32.totalorder %s662, %s644
                  %s664 = scalar_select %p663, 0, %s662
                  %s665 = smul.u32 %s664, 32
                  %s666 = smul.u32 %s664, 32
                  %s667 = scalar_lea.vmem %s572, %s665 [#allocation2]
                  %s668 = scalar_lea.vmem %s583, %s666
                $region79: #{tpu_custom_call.1} parent=73 // loop_footer
                  %s648 = sadd.s32 %s646, 1
                $region80: #{tpu_custom_call.1} parent=73 // loop_footer_branch
                  %645 = sbr.rel target = $region76
                $region81: #{tpu_custom_call.1} parent=73 // loop_exit
                  _
                %s669 = sshrl.u32 %s579, 2
                %s670 = sand.u32 %s579, 3
                %s671 = smul.u32 %s669, 4
                %s672 = smul.u32 8, %s671
                %s673 = scalar_lea.vmem %s572, %s672 [#allocation2]
                %s674 = smul.u32 8, %s671
                %s675 = scalar_lea.vmem %s583, %s674
                // While loop
                $region82: #{tpu_custom_call.1} parent=73 // loop_pre_header
                  _
                $region83: #{tpu_custom_call.1} parent=73 // loop_header
                  %s677 = sphi 0, %s679
                  %p678 = scmp.ge.s32.totalorder %s677, %s670
                  %s682 = sphi 0, %s689
                  %s683 = sphi %s673, %s692
                  %s684 = sphi %s675, %s693
                $region84: #{tpu_custom_call.1} parent=73 // loop_header_branch
                  %681 = sbr.rel (%p678) target = $region88
                $region85: #{tpu_custom_call.1} parent=73 // loop_body
                  %v685 = vld [vmem:[%s683] sm:$0xff]
                  %686 = vst [vmem:[%s684] sm:$0xff] %v685
                  %s687 = sadd.s32 1, %s682
                  %p688 = scmp.ge.s32.totalorder %s687, %s670
                  %s689 = scalar_select %p688, 0, %s687
                  %s690 = smul.u32 %s689, 8
                  %s691 = smul.u32 %s689, 8
                  %s692 = scalar_lea.vmem %s673, %s690 [#allocation2]
                  %s693 = scalar_lea.vmem %s675, %s691
                $region86: #{tpu_custom_call.1} parent=73 // loop_footer
                  %s679 = sadd.s32 %s677, 1
                $region87: #{tpu_custom_call.1} parent=73 // loop_footer_branch
                  %676 = sbr.rel target = $region83
                $region88: #{tpu_custom_call.1} parent=73 // loop_exit
                  _
              $region74: #{tpu_custom_call.1} parent=51 // pred_fallthru
                _
              // Predicated region
              $region89: #{tpu_custom_call.1} parent=51 // pred_check
                _
              $region90: #{tpu_custom_call.1} parent=51 // pred_check_branch
                %695 = sbr.rel target = $region92
              $region91: #{tpu_custom_call.1} parent=51 // pred_region
                _
              $region92: #{tpu_custom_call.1} parent=51 // pred_fallthru
                _
            $region52: #{tpu_custom_call.1} parent=47 // pred_fallthru
              _
            // Predicated region
            $region53: #{tpu_custom_call.1} parent=47 // pred_check
              _
            $region54: #{tpu_custom_call.1} parent=47 // pred_check_branch
              %590 = sbr.rel target = $region56
            $region55: #{tpu_custom_call.1} parent=47 // pred_region
              %s592 = sshrl.u32 %s579, 2
              // While loop
              $region57: #{tpu_custom_call.1} parent=55 // loop_pre_header
                _
              $region58: #{tpu_custom_call.1} parent=55 // loop_header
                %s594 = sphi 0, %s596
                %p595 = scmp.ge.s32.totalorder %s594, %s592
                %s599 = sphi 0, %s612
                %s600 = sphi %s572, %s615
                %s601 = sphi %s583, %s616
              $region59: #{tpu_custom_call.1} parent=55 // loop_header_branch
                %598 = sbr.rel (%p595) target = $region63
              $region60: #{tpu_custom_call.1} parent=55 // loop_body
                %v602 = vld [vmem:[%s600] sm:$0xff]
                %603 = vst [vmem:[%s601] sm:$0xff] %v602
                %v604 = vld [vmem:[%s600 + $0x8] sm:$0xff]
                %605 = vst [vmem:[%s601 + $0x8] sm:$0xff] %v604
                %v606 = vld [vmem:[%s600 + $0x10] sm:$0xff]
                %607 = vst [vmem:[%s601 + $0x10] sm:$0xff] %v606
                %v608 = vld [vmem:[%s600 + $0x18] sm:$0xff]
                %609 = vst [vmem:[%s601 + $0x18] sm:$0xff] %v608
                %s610 = sadd.s32 1, %s599
                %p611 = scmp.ge.s32.totalorder %s610, %s592
                %s612 = scalar_select %p611, 0, %s610
                %s613 = smul.u32 %s612, 32
                %s614 = smul.u32 %s612, 32
                %s615 = scalar_lea.vmem %s572, %s613 [#allocation2]
                %s616 = scalar_lea.vmem %s583, %s614
              $region61: #{tpu_custom_call.1} parent=55 // loop_footer
                %s596 = sadd.s32 %s594, 1
              $region62: #{tpu_custom_call.1} parent=55 // loop_footer_branch
                %593 = sbr.rel target = $region58
              $region63: #{tpu_custom_call.1} parent=55 // loop_exit
                _
              %s617 = sshrl.u32 %s579, 2
              %s618 = sand.u32 %s579, 3
              %s619 = smul.u32 %s617, 4
              %s620 = smul.u32 8, %s619
              %s621 = scalar_lea.vmem %s572, %s620 [#allocation2]
              %s622 = smul.u32 8, %s619
              %s623 = scalar_lea.vmem %s583, %s622
              // While loop
              $region64: #{tpu_custom_call.1} parent=55 // loop_pre_header
                _
              $region65: #{tpu_custom_call.1} parent=55 // loop_header
                %s625 = sphi 0, %s627
                %p626 = scmp.ge.s32.totalorder %s625, %s618
                %s630 = sphi 0, %s637
                %s631 = sphi %s621, %s640
                %s632 = sphi %s623, %s641
              $region66: #{tpu_custom_call.1} parent=55 // loop_header_branch
                %629 = sbr.rel (%p626) target = $region70
              $region67: #{tpu_custom_call.1} parent=55 // loop_body
                %v633 = vld [vmem:[%s631] sm:$0xff]
                %634 = vst [vmem:[%s632] sm:$0xff] %v633
                %s635 = sadd.s32 1, %s630
                %p636 = scmp.ge.s32.totalorder %s635, %s618
                %s637 = scalar_select %p636, 0, %s635
                %s638 = smul.u32 %s637, 8
                %s639 = smul.u32 %s637, 8
                %s640 = scalar_lea.vmem %s621, %s638 [#allocation2]
                %s641 = scalar_lea.vmem %s623, %s639
              $region68: #{tpu_custom_call.1} parent=55 // loop_footer
                %s627 = sadd.s32 %s625, 1
              $region69: #{tpu_custom_call.1} parent=55 // loop_footer_branch
                %624 = sbr.rel target = $region65
              $region70: #{tpu_custom_call.1} parent=55 // loop_exit
                _
            $region56: #{tpu_custom_call.1} parent=47 // pred_fallthru
              _
          $region48: #{tpu_custom_call.1} parent=43 // pred_fallthru
            _
          %696 = vnop
        $region44: #{tpu_custom_call.1} parent=39 // pred_fallthru
          _
      $region40: #{tpu_custom_call.1} parent=5 // pred_fallthru
        _
      %p697 = scmp.le.s32.totalorder 2, %s11
      // Predicated region
      $region93: #{tpu_custom_call.1} parent=5 // pred_check
        %p698 = pneg %p697
      $region94: #{tpu_custom_call.1} parent=5 // pred_check_branch
        %700 = sbr.rel (%p698) target = $region96
      $region95: #{tpu_custom_call.1} parent=5 // pred_region
        %s701 = ssub.s32 %s11, 2
        // Predicated region
        $region97: #{tpu_custom_call.1} parent=95 // pred_check
          %p702 = pneg %p150
        $region98: #{tpu_custom_call.1} parent=95 // pred_check_branch
          %704 = sbr.rel (%p702) target = $region100
        $region99: #{tpu_custom_call.1} parent=95 // pred_region
          %s705 = sand.u32 %s135, 1
          %s706 = sand.u32 %s135, 1
          %s707 = smul.addr %s706, 32
          %s708 = scalar_lea.vmem [#allocation2], %s707
        $region100: #{tpu_custom_call.1} parent=95 // pred_fallthru
          _
      $region96: #{tpu_custom_call.1} parent=5 // pred_fallthru
        _
    $region6: #{tpu_custom_call.1} parent=1 // loop_footer
      %s15 = sadd.s32 1, %s11
    $region7: #{tpu_custom_call.1} parent=1 // loop_footer_branch
      %10 = sbr.rel target = $region3
    $region8: #{tpu_custom_call.1} parent=1 // loop_exit
      _

</llo_original>
